<compile_context>
chip_gen: v7x
topology: tpu7x:2x2x1
jax: 0.10.0
libtpu: 0.0.40
codegen_flags: <defaults>
</compile_context>

<pallas_src>
import functools

import jax
import jax.numpy as jnp
from jax.experimental import pallas as pl
from jax.experimental.pallas import tpu as pltpu


def _div65535_kernel(x_ref, o_ref):
    # DMA-bound: one divide per element; EUP/VALU never become the bottleneck.
    x = x_ref[...].astype(jnp.float32)
    o_ref[...] = (x / jnp.float32(65535.0)).astype(o_ref.dtype)


@functools.lru_cache(maxsize=1)
def _pick_tiling():
    """Returns (target_block_bytes, vmem_limit_bytes), generation-aware."""
    try:
        vmem = int(pltpu.get_tpu_info().vmem_capacity_bytes)
    except Exception:
        # Unknown hardware: conservative defaults safe on every generation.
        return 4 * 1024 * 1024, 32 * 1024 * 1024
    if vmem >= 96 * 1024 * 1024:
        # v5e / v6e: 128 MiB physical VMEM -> big blocks, generous scoped limit.
        return 8 * 1024 * 1024, 64 * 1024 * 1024
    # v7x: 64 MiB physical VMEM. 8 MiB blocks double-buffered (in+out) = 32 MiB.
    return 8 * 1024 * 1024, 40 * 1024 * 1024


def div65535(x: jax.Array) -> jax.Array:
    """Computes x / 65535.0 with a Pallas TPU kernel (any shape / dtype)."""
    orig_shape = x.shape
    in_dtype = x.dtype

    # PyTorch promotion: float tensor / python float keeps dtype; integer/bool
    # tensors promote to float32.
    if jnp.issubdtype(in_dtype, jnp.floating):
        out_dtype = in_dtype
    else:
        out_dtype = jnp.float32

    n = x.size
    if n == 0:
        return jnp.zeros(orig_shape, out_dtype)

    lanes = 128
    in_item = jnp.dtype(in_dtype).itemsize
    out_item = jnp.dtype(out_dtype).itemsize
    max_item = max(in_item, out_item)
    # Sublane multiple legal for both in/out dtypes (8 for 4B, 16 for 2B, 32 for 1B).
    sublane_mult = max(8, 32 // in_item, 32 // out_item)

    block_bytes, vmem_limit = _pick_tiling()

    compiler_params = pltpu.CompilerParams(
        dimension_semantics=("parallel",),
        vmem_limit_bytes=vmem_limit,
    )
    cost = pl.CostEstimate(
        flops=n,
        transcendentals=0,
        bytes_accessed=n * (in_item + out_item),
    )

    if n % lanes == 0:
        # Lane-aligned fast path: free reshape to (rows, 128); no pad, no slice.
        rows = n // lanes
        x2d = x.reshape(rows, lanes)
        tr_target = (block_bytes // (lanes * max_item)) // sublane_mult * sublane_mult
        tr_target = max(sublane_mult, tr_target)
        # Single full-extent block for small inputs (always tile-legal);
        # otherwise a sublane-aligned row tile with a cdiv grid (partial last
        # block handled by the pipeline even if rows % sublane_mult != 0).
        tr = rows if rows <= tr_target else tr_target
        grid = (pl.cdiv(rows, tr),)
        out2d = pl.pallas_call(
            _div65535_kernel,
            out_shape=jax.ShapeDtypeStruct((rows, lanes), out_dtype),
            grid_spec=pltpu.PrefetchScalarGridSpec(
                num_scalar_prefetch=0,
                grid=grid,
                in_specs=[pl.BlockSpec((tr, lanes), lambda i: (i, 0))],
                out_specs=pl.BlockSpec((tr, lanes), lambda i: (i, 0)),
            ),
            compiler_params=compiler_params,
            cost_estimate=cost,
        )(x2d)
        return out2d.reshape(orig_shape)

    # Ragged path (n % 128 != 0): flat 1-D view, no pad / no trailing slice.
    x1d = jnp.ravel(x)
    align = sublane_mult * lanes
    blk_target = max(align, (block_bytes // max_item) // align * align)
    # Full-array single block for small inputs (legal regardless of alignment);
    # otherwise aligned blocks with a masked partial final block.
    blk = n if n <= blk_target else blk_target
    grid = (pl.cdiv(n, blk),)
    out1d = pl.pallas_call(
        _div65535_kernel,
        out_shape=jax.ShapeDtypeStruct((n,), out_dtype),
        grid_spec=pltpu.PrefetchScalarGridSpec(
            num_scalar_prefetch=0,
            grid=grid,
            in_specs=[pl.BlockSpec((blk,), lambda i: (i,))],
            out_specs=pl.BlockSpec((blk,), lambda i: (i,)),
        ),
        compiler_params=compiler_params,
        cost_estimate=cost,
    )(x1d)
    return out1d.reshape(orig_shape)


if __name__ == "__main__":
    key = jax.random.PRNGKey(0)

    # NCHW input consistent with typical usage of the module (16-bit image range).
    x = jax.random.uniform(
        key, (2, 4, 16, 16), dtype=jnp.float32, minval=0.0, maxval=65535.0
    )
    out = jax.block_until_ready(div65535(x))
    ref = x / 65535.0
    assert out.shape == x.shape and out.dtype == x.dtype
    assert jnp.allclose(out, ref, rtol=1e-6, atol=1e-6), "mismatch (aligned)"

    # Non-lane-aligned shape: exercises the pad-free 1-D ragged path.
    y = jax.random.uniform(
        jax.random.PRNGKey(1), (3, 5, 7, 11), dtype=jnp.float32,
        minval=0.0, maxval=65535.0,
    )
    out_y = jax.block_until_ready(div65535(y))
    assert jnp.allclose(out_y, y / 65535.0, rtol=1e-6, atol=1e-6), "mismatch (ragged)"

    # Integer input: PyTorch-style promotion to float32 output.
    z = jax.random.randint(jax.random.PRNGKey(2), (16, 16), 0, 65536, dtype=jnp.int32)
    out_z = jax.block_until_ready(div65535(z))
    assert out_z.dtype == jnp.float32
    assert jnp.allclose(out_z, z.astype(jnp.float32) / 65535.0, rtol=1e-6, atol=1e-6), \
        "mismatch (int promotion)"

    print("KERNEL_OK")
</pallas_src>

<mosaic_0001>
module attributes {stable_mosaic.version = 11 : i64} {
  func.func @_div65535_kernel(%arg0: i32, %arg1: memref<16x128xf32, #tpu.memory_space<vmem>>, %arg2: memref<16x128xf32, #tpu.memory_space<vmem>>) attributes {dimension_semantics = [#tpu.dimension_semantics<parallel>], iteration_bounds = array<i64: 1>, scalar_prefetch = 0 : i64, scratch_operands = 0 : i64, tpu.core_type = #tpu.core_type<tc>, window_params = [{transform_indices = @transform_0, window_bounds = array<i64: 16, 128>}, {transform_indices = @transform_1, window_bounds = array<i64: 16, 128>}]} {
    %c0 = arith.constant 0 : index
    %c0_0 = arith.constant 0 : index
    %0 = vector.load %arg1[%c0, %c0_0] : memref<16x128xf32, #tpu.memory_space<vmem>>, vector<16x128xf32>
    %cst = arith.constant 6.553500e+04 : f32
    %1 = vector.broadcast %cst : f32 to vector<16x128xf32>
    %2 = arith.divf %0, %1 : vector<16x128xf32>
    %c0_1 = arith.constant 0 : index
    %c0_2 = arith.constant 0 : index
    %3 = vector.load %arg2[%c0_1, %c0_2] : memref<16x128xf32, #tpu.memory_space<vmem>>, vector<16x128xf32>
    tpu.vector_store %arg2[%c0_1, %c0_2], %2 {strides = array<i32>} : memref<16x128xf32, #tpu.memory_space<vmem>>, vector<16x128xf32>,
    return
  }
  func.func @transform_0(%arg0: i32) -> (i32, i32) {
    %c0_i32 = arith.constant 0 : i32
    %c0_i32_0 = arith.constant 0 : i32
    return %arg0, %c0_i32 : i32, i32
  }
  func.func @transform_1(%arg0: i32) -> (i32, i32) {
    %c0_i32 = arith.constant 0 : i32
    %c0_i32_0 = arith.constant 0 : i32
    return %arg0, %c0_i32 : i32, i32
  }
}

</mosaic_0001>

<llo_original>
// kernel: tpu_custom_call.1
$region0: #{tpu_custom_call.1}
  #allocation0 [shape = 'u32[]', space=smem, size = 0x4, offset = 0x4, fixed_abs, tag = 'smem constant byte address 0x4 - core index']
  #allocation1 [shape = 'u32[144,128]{1,0:T(1,128)}', space=vmem, size = 0x12000, scoped, tag = 'internal scratch']
  %s0 = inlined_call_operand.hbm [shape: f32[16,128], index: 0, kind: input, shape index: {}]
  %s1 = inlined_call_operand.hbm [shape: f32[16,128], index: 1, kind: output, shape index: {}]
  %s2 = sld [smem:[#allocation0]]
  $region18: #{tpu_custom_call.1} parent=0
    _
  %s4 = ssub.s32 1, %s2
  %s5 = scalar_select 0, %s4, %s2
  $region1: #{tpu_custom_call.1} parent=0
    #allocation2 [shape = 'u8[8192]{0}', space=vmem, size = 0x2000, scoped, tag = 'input window, operand 0, single buffered']
    #allocation3 [shape = 's32[1]{0}', space=sflag, size = 0x4, scoped, tag = 'scoped memory for tpu_custom_call.1']
    #allocation4 [shape = 's32[1]{0}', space=sflag, size = 0x4, scoped, tag = 'scoped memory for tpu_custom_call.1']
    #allocation5 [shape = 'u8[8192]{0}', space=vmem, size = 0x2000, scoped, tag = 'output window, operand 0, single buffered']
    %6 = vsyncpa [#allocation3], 0
    %7 = vsyncpa [#allocation4], 0
    // Predicated region
    $region2: #{tpu_custom_call.1} parent=1 // pred_check
      _
    $region3: #{tpu_custom_call.1} parent=1 // pred_check_branch
      %9 = sbr.rel (0) target = $region5
    $region4: #{tpu_custom_call.1} parent=1 // pred_region
      %s11 = ssub.s32 256, 256
      %12 = vsyncadd [#allocation3], %s11
      %s13 = sshll.u32 [#allocation2], 4
      %s14 = int_to_ptr.vmem [resolvable:$true] %s13
      %19 = dma.hbm_to_vmem [thread:$0]  %s0, 256, %s14, [#allocation3], 128, 128, 8
    $region5: #{tpu_custom_call.1} parent=1 // pred_fallthru
      _
    // Predicated region
    $region6: #{tpu_custom_call.1} parent=1 // pred_check
      _
    $region7: #{tpu_custom_call.1} parent=1 // pred_check_branch
      %21 = sbr.rel (0) target = $region9
    $region8: #{tpu_custom_call.1} parent=1 // pred_region
      %22 = dma.done [#allocation3], 256
    $region9: #{tpu_custom_call.1} parent=1 // pred_fallthru
      _
    %v23 = vld [vmem:[#allocation2] sm:$0xff]
    %v24 = vld [vmem:[#allocation2 + $0x8] sm:$0xff]
    %v25 = vrcp.pop 65535.0
    %v26 = vmul.f32 %v23, %v25
    %v27 = vmul.f32 %v24, %v25
    %28 = vst [vmem:[#allocation5] sm:$0xff] %v26
    %29 = vst [vmem:[#allocation5 + $0x8] sm:$0xff] %v27
    // Predicated region
    $region10: #{tpu_custom_call.1} parent=1 // pred_check
      _
    $region11: #{tpu_custom_call.1} parent=1 // pred_check_branch
      %31 = sbr.rel (0) target = $region13
    $region12: #{tpu_custom_call.1} parent=1 // pred_region
      %s33 = ssub.s32 256, 256
      %34 = vsyncadd [#allocation4], %s33
      %s35 = sshll.u32 [#allocation5], 4
      %s36 = int_to_ptr.vmem [resolvable:$true] %s35
      %41 = dma.vmem_to_hbm [thread:$0]  %s36, 256, %s1, [#allocation4], 128, 128, 8
    $region13: #{tpu_custom_call.1} parent=1 // pred_fallthru
      _
    // Predicated region
    $region14: #{tpu_custom_call.1} parent=1 // pred_check
      _
    $region15: #{tpu_custom_call.1} parent=1 // pred_check_branch
      %43 = sbr.rel (0) target = $region17
    $region16: #{tpu_custom_call.1} parent=1 // pred_region
      %44 = dma.done [#allocation4], 256
    $region17: #{tpu_custom_call.1} parent=1 // pred_fallthru
      _
    %45 = vsyncpa [#allocation3], 1
    %46 = vsyncpa [#allocation4], 1

</llo_original>
